<compile_context>
chip_gen: v7x
topology: tpu7x:2x2x1
jax: 0.10.0
libtpu: 0.0.40
codegen_flags: <defaults>
</compile_context>

<pallas_src>
import functools
import math

import jax
import jax.numpy as jnp
from jax import lax
from jax.experimental import pallas as pl
from jax.experimental.pallas import tpu as pltpu


# ----------------------------------------------------------------------------
# Per-generation scoped-VMEM request (~75% of physical VMEM per TensorCore).
#   v5e/v6e: 128 MiB physical -> ~96 MiB request; v7x: 64 MiB -> 48 MiB.
# ----------------------------------------------------------------------------
def _default_vmem_limit_bytes():
    try:
        phys = int(pltpu.get_tpu_info().vmem_capacity_bytes)
    except Exception:
        phys = 64 * 1024 * 1024          # conservative fallback -> 48 MiB request
    return min((phys * 3) // 4, 100 * 1024 * 1024)


_VMEM_LIMIT_BYTES = _default_vmem_limit_bytes()


# ----------------------------------------------------------------------------
# Bilinear interpolation matrix (PyTorch semantics, align_corners=False).
# ----------------------------------------------------------------------------
def bilinear_matrix(out_size: int, in_size: int, dtype=jnp.float32):
    """Row-interpolation matrix M (out_size, in_size): y = M @ x."""
    scale = in_size / out_size
    dst = jnp.arange(out_size, dtype=jnp.float32)
    # PyTorch: src = max(0, (dst + 0.5) * scale - 0.5)
    src = jnp.maximum((dst + 0.5) * scale - 0.5, 0.0)
    i0 = jnp.floor(src).astype(jnp.int32)
    i0 = jnp.minimum(i0, in_size - 1)
    i1 = jnp.minimum(i0 + 1, in_size - 1)
    w1 = src - i0.astype(jnp.float32)
    w0 = 1.0 - w1
    rows = jnp.arange(out_size)
    m = jnp.zeros((out_size, in_size), jnp.float32)
    m = m.at[rows, i0].add(w0)
    m = m.at[rows, i1].add(w1)
    return m.astype(dtype)


# ----------------------------------------------------------------------------
# Pallas kernel: nb planes per grid step.
#   x_ref:   (nb*h, w)  original dtype   wh_ref:  (H, h)  f32
#   wwt_ref: (w, W)     f32              o_ref:   (nb, H, W)
#   y_ref:   (nb*h, W)  f32 VMEM scratch
# One batched W-direction matmul over all planes, then a per-plane
# H-direction matmul under a bounded fori_loop.
# ----------------------------------------------------------------------------
def _bilinear_kernel(x_ref, wh_ref, wwt_ref, o_ref, y_ref, *, nb, h, compute_dtype):
    # In-kernel cast (VPU, hidden under DMA/MXU) instead of a wrapper-side pass.
    x2 = x_ref[...].astype(compute_dtype)              # (nb*h, w)
    wwt = wwt_ref[...].astype(compute_dtype)           # (w, W)
    # Single batched W-direction matmul across all nb planes in the block.
    y_ref[...] = jnp.dot(x2, wwt, preferred_element_type=jnp.float32)  # (nb*h, W) f32

    wh = wh_ref[...]                                    # (H, h) f32, hoisted

    def body(n, carry):
        start = pl.multiple_of(n * h, h)
        y_n = y_ref[pl.ds(start, h), :]                 # (h, W) f32 — no extra rounding
        o_ref[n] = jnp.dot(wh, y_n,
                           preferred_element_type=jnp.float32).astype(o_ref.dtype)
        return carry

    lax.fori_loop(0, nb, body, 0, unroll=min(8, nb))


# ----------------------------------------------------------------------------
# Block-size picker: largest nb whose blocks fit the VMEM budget, with
#   * grid_n >= 2 when possible (v7x megacore),
#   * nb*h % 8 == 0 (clean 2-D flattened BlockSpec), and
#   * nb | n_planes when possible (no partial edge block, no padding).
# ----------------------------------------------------------------------------
def _pick_planes_per_step(n_planes, h, w, H, W, in_item, out_item, vmem_limit):
    per_plane = (2 * h * w * in_item          # double-buffered input block
                 + 2 * H * W * out_item       # double-buffered output block
                 + h * W * 4)                 # f32 y-scratch (single buffer)
    const = 2 * (H * h + w * W) * 4           # Wh + WwT (f32, double-buffered)
    budget = int(vmem_limit * 0.85) - const   # single headroom factor (no double hedge)
    nb_budget = max(1, budget // per_plane)
    nb_cap = min(nb_budget, max(1, -(-n_planes // 2)), n_planes)  # grid_n >= 2

    step = 8 // math.gcd(h, 8)                # makes nb*h a multiple of 8
    # Prefer the largest nb <= cap that is a multiple of `step` and divides
    # n_planes exactly (no partial edge block).
    for nb in range(nb_cap, 0, -1):
        if nb % step == 0 and n_planes % nb == 0:
            return nb
    # Fallback: multiple of `step`; the last grid block is partial (masked writes).
    nb = (nb_cap // step) * step
    if nb >= 1:
        return nb
    # Tiny case: one full block covering all planes (legal: block == full extent).
    # TODO(synk): H/W tiling if even a single plane exceeds the VMEM budget.
    return n_planes


@functools.partial(jax.jit, static_argnums=(1, 2, 3, 4))
def bilinear_resize_nchw(x, H, W, compute_dtype=jnp.bfloat16, out_dtype=None):
    """F.interpolate(x, size=(H, W), mode='bilinear') for NCHW x (Pallas)."""
    B, C, h, w = x.shape
    out_dtype = x.dtype if out_dtype is None else out_dtype
    in_item = jnp.dtype(x.dtype).itemsize
    out_item = jnp.dtype(out_dtype).itemsize

    n_planes = B * C
    nb = _pick_planes_per_step(n_planes, h, w, H, W, in_item, out_item,
                               _VMEM_LIMIT_BYTES)
    grid_n = (n_planes + nb - 1) // nb

    wh = bilinear_matrix(H, h)          # (H, h) f32
    ww_t = bilinear_matrix(W, w).T      # (w, W) f32, pre-transposed

    # Free reshape (contiguous leading dims); no dtype cast here — cast in-kernel.
    x_flat = x.reshape(n_planes * h, w)

    flops = 2 * n_planes * (h * w * W + H * h * W)
    bytes_accessed = (n_planes * h * w * in_item
                      + n_planes * H * W * out_item
                      + (H * h + w * W) * 4)

    out = pl.pallas_call(
        functools.partial(_bilinear_kernel, nb=nb, h=h, compute_dtype=compute_dtype),
        out_shape=jax.ShapeDtypeStruct((n_planes, H, W), out_dtype),
        grid_spec=pltpu.PrefetchScalarGridSpec(
            num_scalar_prefetch=0,
            grid=(grid_n,),
            in_specs=[
                pl.BlockSpec((nb * h, w), lambda i: (i, 0)),
                pl.BlockSpec((H, h), lambda i: (0, 0)),
                pl.BlockSpec((w, W), lambda i: (0, 0)),
            ],
            out_specs=pl.BlockSpec((nb, H, W), lambda i: (i, 0, 0)),
            scratch_shapes=[pltpu.VMEM((nb * h, W), jnp.float32)],
        ),
        compiler_params=pltpu.CompilerParams(
            dimension_semantics=("parallel",),      # plane axis is independent
            vmem_limit_bytes=_VMEM_LIMIT_BYTES,
        ),
        cost_estimate=pl.CostEstimate(
            flops=flops, transcendentals=0, bytes_accessed=bytes_accessed),
    )(x_flat, wh, ww_t)

    return out.reshape(B, C, H, W)


# ----------------------------------------------------------------------------
# Synthetic wrapped model (plain-JAX glue): 1x1 conv + stride-2 subsample,
# returns {'pred': ...} at half resolution (so the interpolate matters).
# TODO(synk): the wrapped `model` in RestoreShape is arbitrary PyTorch; only a
#   synthetic stand-in is implemented here, the kernel covers the resize.
# ----------------------------------------------------------------------------
def make_inner_model(c_in, c_out, key):
    kw, kb = jax.random.split(key)
    weight = jax.random.normal(kw, (c_out, c_in), jnp.float32) * 0.1
    bias = jax.random.normal(kb, (c_out,), jnp.float32) * 0.01

    def model(x):  # x: NCHW
        xs = x[:, :, ::2, ::2]                                # stride-2 subsample
        y = jnp.einsum('oc,bchw->bohw', weight, xs) + bias[None, :, None, None]
        return {'pred': y}

    return model


# ----------------------------------------------------------------------------
# RestoreShape forward (mirrors the PyTorch module's dict / non-dict branch).
# ----------------------------------------------------------------------------
def restore_shape_forward(model_fn, x, keys=('pred',),
                          compute_dtype=jnp.bfloat16):
    B, C, H, W = x.shape
    res = model_fn(x)
    if isinstance(res, dict):
        for k in keys:
            res[k] = bilinear_resize_nchw(res[k], H, W, compute_dtype)
    else:
        res = bilinear_resize_nchw(res, H, W, compute_dtype)
    return res


if __name__ == "__main__":
    key = jax.random.PRNGKey(0)
    kx, kp = jax.random.split(key)

    B, C, H, W = 2, 4, 16, 16
    x = jax.random.normal(kx, (B, C, H, W), jnp.float32)

    model_fn = make_inner_model(c_in=C, c_out=C, key=kp)

    # End-to-end RestoreShape forward (default bf16 compute path).
    res = restore_shape_forward(model_fn, x, keys=['pred'])
    pred = jax.block_until_ready(res['pred'])
    assert pred.shape == (B, C, H, W), pred.shape
    assert pred.dtype == x.dtype, pred.dtype          # F.interpolate preserves dtype

    # Reference: same separable bilinear formulation in plain f32 jnp.
    low = model_fn(x)['pred']
    wh_ref = bilinear_matrix(H, low.shape[2])
    ww_ref = bilinear_matrix(W, low.shape[3])
    ref = jnp.einsum('Hh,bchw,Ww->bcHW', wh_ref, low, ww_ref)

    # 1) Tight check of the kernel itself on the f32 compute path.
    pred_f32 = jax.block_until_ready(
        bilinear_resize_nchw(low, H, W, jnp.float32))
    assert jnp.allclose(pred_f32, ref, atol=1e-5, rtol=1e-5)

    # 2) Loose check of the default bf16 path (input rounding ~0.4% rel).
    assert jnp.allclose(pred, ref, atol=3e-2, rtol=3e-2)

    print("KERNEL_OK")
</pallas_src>

<mosaic_0001>
module attributes {stable_mosaic.version = 11 : i64} {
  func.func private @main(%arg0: i32) attributes {dimension_semantics = [#tpu.dimension_semantics<core_parallel>], iteration_bounds = array<i64: 2>, tpu.core_type = #tpu.core_type<sc_scalar_subcore>, window_params = []} {
    return
  }
}

module attributes {stable_mosaic.version = 11 : i64} {
  func.func private @main(%arg0: i32) attributes {dimension_semantics = [#tpu.dimension_semantics<core_parallel>], iteration_bounds = array<i64: 2>, tpu.core_type = #tpu.core_type<sc_scalar_subcore>, window_params = []} {
    return
  }
}

module attributes {stable_mosaic.version = 11 : i64} {
  func.func @_bilinear_kernel(%arg0: i32, %arg1: memref<32x8xf32, #tpu.memory_space<vmem>>, %arg2: memref<16x8xf32, #tpu.memory_space<vmem>>, %arg3: memref<8x16xf32, #tpu.memory_space<vmem>>, %arg4: memref<4x16x16xf32, #tpu.memory_space<vmem>>, %arg5: memref<32x16xf32, #tpu.memory_space<vmem>>) attributes {dimension_semantics = [#tpu.dimension_semantics<parallel>], iteration_bounds = array<i64: 2>, scalar_prefetch = 0 : i64, scratch_operands = 1 : i64, tpu.core_type = #tpu.core_type<tc>, window_params = [{transform_indices = @transform_0, window_bounds = array<i64: 32, 8>}, {pipeline_mode = #tpu.pipeline_mode<synchronous>, transform_indices = @transform_1, window_bounds = array<i64: 16, 8>}, {pipeline_mode = #tpu.pipeline_mode<synchronous>, transform_indices = @transform_2, window_bounds = array<i64: 8, 16>}, {transform_indices = @transform_3, window_bounds = array<i64: 4, 16, 16>}]} {
    %c0 = arith.constant 0 : index
    %c0_0 = arith.constant 0 : index
    %0 = vector.load %arg1[%c0, %c0_0] : memref<32x8xf32, #tpu.memory_space<vmem>>, vector<32x8xf32>
    %1 = arith.truncf %0 : vector<32x8xf32> to vector<32x8xbf16>
    %c0_1 = arith.constant 0 : index
    %c0_2 = arith.constant 0 : index
    %2 = vector.load %arg3[%c0_1, %c0_2] : memref<8x16xf32, #tpu.memory_space<vmem>>, vector<8x16xf32>
    %3 = arith.truncf %2 : vector<8x16xf32> to vector<8x16xbf16>
    %cst = arith.constant dense<0.000000e+00> : vector<32x16xf32>
    %4 = tpu.matmul %1, %3, %cst {dimension_numbers = #tpu.dot_dimension_numbers<[1], [0], [0], [1], [0, 0, 1, 1], [], []>} : vector<32x8xbf16>, vector<8x16xbf16>, vector<32x16xf32> -> vector<32x16xf32>
    %c0_3 = arith.constant 0 : index
    %c0_4 = arith.constant 0 : index
    %5 = vector.load %arg5[%c0_3, %c0_4] : memref<32x16xf32, #tpu.memory_space<vmem>>, vector<32x16xf32>
    tpu.vector_store %arg5[%c0_3, %c0_4], %4 {strides = array<i32>} : memref<32x16xf32, #tpu.memory_space<vmem>>, vector<32x16xf32>,
    %c0_5 = arith.constant 0 : index
    %c0_6 = arith.constant 0 : index
    %6 = vector.load %arg2[%c0_5, %c0_6] : memref<16x8xf32, #tpu.memory_space<vmem>>, vector<16x8xf32>
    %c0_i32 = arith.constant 0 : i32
    %c8_i32 = arith.constant 8 : i32
    %7 = arith.muli %c0_i32, %c8_i32 : i32
    %8 = tpu.assume_multiple %7, 8 : i32
    %9 = arith.index_cast %8 : i32 to index
    %c0_7 = arith.constant 0 : index
    %10 = vector.load %arg5[%9, %c0_7] : memref<32x16xf32, #tpu.memory_space<vmem>>, vector<8x16xf32>
    %cst_8 = arith.constant dense<0.000000e+00> : vector<16x16xf32>
    %11 = tpu.matmul %6, %10, %cst_8 {dimension_numbers = #tpu.dot_dimension_numbers<[1], [0], [0], [1], [0, 0, 1, 1], [], []>} : vector<16x8xf32>, vector<8x16xf32>, vector<16x16xf32> -> vector<16x16xf32>
    %12 = arith.index_cast %c0_i32 : i32 to index
    %c0_9 = arith.constant 0 : index
    %c0_10 = arith.constant 0 : index
    %13 = vector.load %arg4[%12, %c0_9, %c0_10] : memref<4x16x16xf32, #tpu.memory_space<vmem>>, vector<1x16x16xf32>
    %14 = vector.shape_cast %13 : vector<1x16x16xf32> to vector<16x16xf32>
    %15 = vector.shape_cast %11 : vector<16x16xf32> to vector<1x16x16xf32>
    tpu.vector_store %arg4[%12, %c0_9, %c0_10], %15 {strides = array<i32>} : memref<4x16x16xf32, #tpu.memory_space<vmem>>, vector<1x16x16xf32>,
    %c1_i32 = arith.constant 1 : i32
    %c8_i32_11 = arith.constant 8 : i32
    %16 = arith.muli %c1_i32, %c8_i32_11 : i32
    %17 = tpu.assume_multiple %16, 8 : i32
    %18 = arith.index_cast %17 : i32 to index
    %c0_12 = arith.constant 0 : index
    %19 = vector.load %arg5[%18, %c0_12] : memref<32x16xf32, #tpu.memory_space<vmem>>, vector<8x16xf32>
    %cst_13 = arith.constant dense<0.000000e+00> : vector<16x16xf32>
    %20 = tpu.matmul %6, %19, %cst_13 {dimension_numbers = #tpu.dot_dimension_numbers<[1], [0], [0], [1], [0, 0, 1, 1], [], []>} : vector<16x8xf32>, vector<8x16xf32>, vector<16x16xf32> -> vector<16x16xf32>
    %21 = arith.index_cast %c1_i32 : i32 to index
    %c0_14 = arith.constant 0 : index
    %c0_15 = arith.constant 0 : index
    %22 = vector.load %arg4[%21, %c0_14, %c0_15] : memref<4x16x16xf32, #tpu.memory_space<vmem>>, vector<1x16x16xf32>
    %23 = vector.shape_cast %22 : vector<1x16x16xf32> to vector<16x16xf32>
    %24 = vector.shape_cast %20 : vector<16x16xf32> to vector<1x16x16xf32>
    tpu.vector_store %arg4[%21, %c0_14, %c0_15], %24 {strides = array<i32>} : memref<4x16x16xf32, #tpu.memory_space<vmem>>, vector<1x16x16xf32>,
    %c2_i32 = arith.constant 2 : i32
    %c8_i32_16 = arith.constant 8 : i32
    %25 = arith.muli %c2_i32, %c8_i32_16 : i32
    %26 = tpu.assume_multiple %25, 8 : i32
    %27 = arith.index_cast %26 : i32 to index
    %c0_17 = arith.constant 0 : index
    %28 = vector.load %arg5[%27, %c0_17] : memref<32x16xf32, #tpu.memory_space<vmem>>, vector<8x16xf32>
    %cst_18 = arith.constant dense<0.000000e+00> : vector<16x16xf32>
    %29 = tpu.matmul %6, %28, %cst_18 {dimension_numbers = #tpu.dot_dimension_numbers<[1], [0], [0], [1], [0, 0, 1, 1], [], []>} : vector<16x8xf32>, vector<8x16xf32>, vector<16x16xf32> -> vector<16x16xf32>
    %30 = arith.index_cast %c2_i32 : i32 to index
    %c0_19 = arith.constant 0 : index
    %c0_20 = arith.constant 0 : index
    %31 = vector.load %arg4[%30, %c0_19, %c0_20] : memref<4x16x16xf32, #tpu.memory_space<vmem>>, vector<1x16x16xf32>
    %32 = vector.shape_cast %31 : vector<1x16x16xf32> to vector<16x16xf32>
    %33 = vector.shape_cast %29 : vector<16x16xf32> to vector<1x16x16xf32>
    tpu.vector_store %arg4[%30, %c0_19, %c0_20], %33 {strides = array<i32>} : memref<4x16x16xf32, #tpu.memory_space<vmem>>, vector<1x16x16xf32>,
    %c3_i32 = arith.constant 3 : i32
    %c8_i32_21 = arith.constant 8 : i32
    %34 = arith.muli %c3_i32, %c8_i32_21 : i32
    %35 = tpu.assume_multiple %34, 8 : i32
    %36 = arith.index_cast %35 : i32 to index
    %c0_22 = arith.constant 0 : index
    %37 = vector.load %arg5[%36, %c0_22] : memref<32x16xf32, #tpu.memory_space<vmem>>, vector<8x16xf32>
    %cst_23 = arith.constant dense<0.000000e+00> : vector<16x16xf32>
    %38 = tpu.matmul %6, %37, %cst_23 {dimension_numbers = #tpu.dot_dimension_numbers<[1], [0], [0], [1], [0, 0, 1, 1], [], []>} : vector<16x8xf32>, vector<8x16xf32>, vector<16x16xf32> -> vector<16x16xf32>
    %39 = arith.index_cast %c3_i32 : i32 to index
    %c0_24 = arith.constant 0 : index
    %c0_25 = arith.constant 0 : index
    %40 = vector.load %arg4[%39, %c0_24, %c0_25] : memref<4x16x16xf32, #tpu.memory_space<vmem>>, vector<1x16x16xf32>
    %41 = vector.shape_cast %40 : vector<1x16x16xf32> to vector<16x16xf32>
    %42 = vector.shape_cast %38 : vector<16x16xf32> to vector<1x16x16xf32>
    tpu.vector_store %arg4[%39, %c0_24, %c0_25], %42 {strides = array<i32>} : memref<4x16x16xf32, #tpu.memory_space<vmem>>, vector<1x16x16xf32>,
    %c4_i32 = arith.constant 4 : i32
    return
  }
  func.func @transform_0(%arg0: i32) -> (i32, i32) {
    %c0_i32 = arith.constant 0 : i32
    %c0_i32_0 = arith.constant 0 : i32
    return %arg0, %c0_i32 : i32, i32
  }
  func.func @transform_1(%arg0: i32) -> (i32, i32) {
    %c0_i32 = arith.constant 0 : i32
    %c0_i32_0 = arith.constant 0 : i32
    %c0_i32_1 = arith.constant 0 : i32
    return %c0_i32, %c0_i32_0 : i32, i32
  }
  func.func @transform_2(%arg0: i32) -> (i32, i32) {
    %c0_i32 = arith.constant 0 : i32
    %c0_i32_0 = arith.constant 0 : i32
    %c0_i32_1 = arith.constant 0 : i32
    return %c0_i32, %c0_i32_0 : i32, i32
  }
  func.func @transform_3(%arg0: i32) -> (i32, i32, i32) {
    %c0_i32 = arith.constant 0 : i32
    %c0_i32_0 = arith.constant 0 : i32
    %c0_i32_1 = arith.constant 0 : i32
    return %arg0, %c0_i32, %c0_i32_0 : i32, i32, i32
  }
}

</mosaic_0001>

<llo_original>
// kernel: bilinear_resize_nchw.1
$region0: #{bilinear_resize_nchw.1}
  #allocation0 [shape = 'u32[]', space=smem, size = 0x4, offset = 0x4, fixed_abs, tag = 'smem constant byte address 0x4 - core index']
  #allocation1 [shape = 'u32[144,128]{1,0:T(1,128)}', space=vmem, size = 0x12000, scoped, tag = 'internal scratch']
  #allocation2 [shape = 'f32[32,16]{1,0:T(8,128)}', space=vmem, size = 0x4000, scoped, tag = 'scratch operand']
  %s0 = inlined_call_operand.vmem [shape: f32[64,8], index: 0, kind: input, shape index: {}]
  %s1 = inlined_call_operand.vmem [shape: f32[16,8], index: 1, kind: input, shape index: {}]
  %s2 = inlined_call_operand.vmem [shape: f32[8,16], index: 2, kind: input, shape index: {}]
  %s3 = inlined_call_operand.hbm [shape: f32[8,16,16], index: 3, kind: output, shape index: {}]
  %s4 = sld [smem:[#allocation0]]
  $region45: #{bilinear_resize_nchw.1} parent=0
    _
  %s6 = ssub.s32 1, %s4
  %s7 = scalar_select 0, %s6, %s4
  $region1: #{bilinear_resize_nchw.1} parent=0
    #allocation3 [shape = 'u8[65536]{0}', space=vmem, size = 0x10000, scoped, tag = 'output window, operand 0']
    #allocation4 [shape = 's32[2]{0}', space=sflag, size = 0x8, scoped, tag = 'scoped memory for bilinear_resize_nchw.1']
    %8 = vsyncpa [#allocation4], 0
    %s9 = scalar_lea.sflag [#allocation4], 1
    %10 = vsyncpa %s9, 0
    loop: start=0, step=1, limit=4
    $region2: #{bilinear_resize_nchw.1} parent=1 // loop_pre_header
      _
    $region3: #{bilinear_resize_nchw.1} parent=1 // loop_header
      %s12 = sphi 0, %s16
      %p13 = scmp.ge.s32.totalorder %s12, 4
      %s22 = sphi 0, %s24
      %s25 = sphi 0, %s22
      %s26 = sphi 0, %s25
      %s42 = sphi 0, %s26
      %s46 = sphi 0, %s46
      %s48 = sphi 0, %s46
      %s49 = sphi 0, %s48
      %s63 = sphi 0, %s49
      %s67 = sphi 0, %s67
      %s69 = sphi 0, %s67
      %s70 = sphi 0, %s69
      %s84 = sphi 0, %s70
      %s90 = sphi 0, %s92
      %s93 = sphi 0, %s90
      %s94 = sphi 0, %s93
      %s110 = sphi 0, %s94
    $region4: #{bilinear_resize_nchw.1} parent=1 // loop_header_branch
      %15 = sbr.rel (%p13) target = $region8
    $region5: #{bilinear_resize_nchw.1} parent=1 // loop_body
      %s17 = ssub.s32 %s12, 1
      %s18 = ssub.s32 %s12, 2
      %s19 = sadd.s32 %s12, 1
      %s20 = ssub.s32 %s12, %s19
      %p21 = scmp.eq.s32.totalorder %s20, 0
      %s23 = sadd.s32 %s22, 1
      %s24 = scalar_select %p21, %s22, %s23
      %p27 = pneg %p21
      %p28 = scmp.eq.s32.totalorder %s12, 1
      %p29 = por %p27, %p28
      %p30 = scmp.ne.s32.totalorder %s22, %s25
      %p31 = scmp.eq.s32.totalorder %s12, 0
      %p32 = por %p30, %p31
      %p33 = scmp.ne.s32.totalorder %s22, %s25
      %p34 = scmp.eq.s32.totalorder %s17, 1
      %p35 = por %p33, %p34
      %p36 = scmp.ne.s32.totalorder %s25, %s26
      %p37 = scmp.eq.s32.totalorder %s17, 0
      %p38 = por %p36, %p37
      %p39 = scmp.ne.s32.totalorder %s25, %s26
      %p40 = scmp.eq.s32.totalorder %s18, 1
      %p41 = por %p39, %p40
      %p43 = scmp.ne.s32.totalorder %s26, %s42
      %p44 = scmp.eq.s32.totalorder %s18, 0
      %p45 = por %p43, %p44
      %s47 = sadd.s32 %s46, 1
      %p50 = scmp.eq.s32.totalorder %s12, 1
      %p51 = scmp.ne.s32.totalorder %s46, %s48
      %p52 = scmp.eq.s32.totalorder %s12, 0
      %p53 = por %p51, %p52
      %p54 = scmp.ne.s32.totalorder %s46, %s48
      %p55 = scmp.eq.s32.totalorder %s17, 1
      %p56 = por %p54, %p55
      %p57 = scmp.ne.s32.totalorder %s48, %s49
      %p58 = scmp.eq.s32.totalorder %s17, 0
      %p59 = por %p57, %p58
      %p60 = scmp.ne.s32.totalorder %s48, %s49
      %p61 = scmp.eq.s32.totalorder %s18, 1
      %p62 = por %p60, %p61
      %p64 = scmp.ne.s32.totalorder %s49, %s63
      %p65 = scmp.eq.s32.totalorder %s18, 0
      %p66 = por %p64, %p65
      %s68 = sadd.s32 %s67, 1
      %p71 = scmp.eq.s32.totalorder %s12, 1
      %p72 = scmp.ne.s32.totalorder %s67, %s69
      %p73 = scmp.eq.s32.totalorder %s12, 0
      %p74 = por %p72, %p73
      %p75 = scmp.ne.s32.totalorder %s67, %s69
      %p76 = scmp.eq.s32.totalorder %s17, 1
      %p77 = por %p75, %p76
      %p78 = scmp.ne.s32.totalorder %s69, %s70
      %p79 = scmp.eq.s32.totalorder %s17, 0
      %p80 = por %p78, %p79
      %p81 = scmp.ne.s32.totalorder %s69, %s70
      %p82 = scmp.eq.s32.totalorder %s18, 1
      %p83 = por %p81, %p82
      %p85 = scmp.ne.s32.totalorder %s70, %s84
      %p86 = scmp.eq.s32.totalorder %s18, 0
      %p87 = por %p85, %p86
      %s88 = ssub.s32 %s12, %s19
      %p89 = scmp.eq.s32.totalorder %s88, 0
      %s91 = sadd.s32 %s90, 1
      %s92 = scalar_select %p89, %s90, %s91
      %p95 = pneg %p89
      %p96 = scmp.eq.s32.totalorder %s12, 1
      %p97 = por %p95, %p96
      %p98 = scmp.ne.s32.totalorder %s90, %s93
      %p99 = scmp.eq.s32.totalorder %s12, 0
      %p100 = por %p98, %p99
      %p101 = scmp.ne.s32.totalorder %s90, %s93
      %p102 = scmp.eq.s32.totalorder %s17, 1
      %p103 = por %p101, %p102
      %p104 = scmp.ne.s32.totalorder %s93, %s94
      %p105 = scmp.eq.s32.totalorder %s17, 0
      %p106 = por %p104, %p105
      %p107 = scmp.ne.s32.totalorder %s93, %s94
      %p108 = scmp.eq.s32.totalorder %s18, 1
      %p109 = por %p107, %p108
      %p111 = scmp.ne.s32.totalorder %s94, %s110
      %p112 = scmp.eq.s32.totalorder %s18, 0
      %p113 = por %p111, %p112
      %p114 = scmp.le.s32.totalorder 1, %s12
      %p115 = scmp.lt.s32.totalorder %s12, 3
      %p116 = pnand %p114, %p115
      %p117 = pneg %p116
      // Predicated region
      $region9: #{bilinear_resize_nchw.1} parent=5 // pred_check
        _
      $region10: #{bilinear_resize_nchw.1} parent=5 // pred_check_branch
        %119 = sbr.rel (%p116) target = $region12
      $region11: #{bilinear_resize_nchw.1} parent=5 // pred_region
        %s120 = ssub.s32 %s12, 1
        // Predicated region
        $region13: #{bilinear_resize_nchw.1} parent=11 // pred_check
          %p121 = pneg %p59
        $region14: #{bilinear_resize_nchw.1} parent=11 // pred_check_branch
          %123 = sbr.rel (%p121) target = $region16
        $region15: #{bilinear_resize_nchw.1} parent=11 // pred_region
          _
        $region16: #{bilinear_resize_nchw.1} parent=11 // pred_fallthru
          _
        // Predicated region
        $region17: #{bilinear_resize_nchw.1} parent=11 // pred_check
          %p124 = pneg %p80
        $region18: #{bilinear_resize_nchw.1} parent=11 // pred_check_branch
          %126 = sbr.rel (%p124) target = $region20
        $region19: #{bilinear_resize_nchw.1} parent=11 // pred_region
          _
        $region20: #{bilinear_resize_nchw.1} parent=11 // pred_fallthru
          _
      $region12: #{bilinear_resize_nchw.1} parent=5 // pred_fallthru
        _
      %p127 = scmp.lt.s32.totalorder %s12, 2
      // Predicated region
      $region21: #{bilinear_resize_nchw.1} parent=5 // pred_check
        %p128 = pneg %p127
      $region22: #{bilinear_resize_nchw.1} parent=5 // pred_check_branch
        %130 = sbr.rel (%p128) target = $region24
      $region23: #{bilinear_resize_nchw.1} parent=5 // pred_region
        // Predicated region
        $region25: #{bilinear_resize_nchw.1} parent=23 // pred_check
          %p131 = pneg %p32
        $region26: #{bilinear_resize_nchw.1} parent=23 // pred_check_branch
          %133 = sbr.rel (%p131) target = $region28
        $region27: #{bilinear_resize_nchw.1} parent=23 // pred_region
          %s134 = smul.u32 4, %s12
          %p135 = scmp.lt.s32.totalorder %s134, 7
          %s136 = scalar_select %p135, %s134, 7
          %s137 = smul.addr %s136, 8
          %s138 = scalar_lea.vmem %s0, %s137
          %s139 = smul.u32 4, %s12
        $region28: #{bilinear_resize_nchw.1} parent=23 // pred_fallthru
          _
      $region24: #{bilinear_resize_nchw.1} parent=5 // pred_fallthru
        _
      %p140 = scmp.le.s32.totalorder 1, %s12
      %p141 = scmp.lt.s32.totalorder %s12, 3
      %p142 = pnand %p140, %p141
      %p143 = pneg %p142
      // Predicated region
      $region29: #{bilinear_resize_nchw.1} parent=5 // pred_check
        _
      $region30: #{bilinear_resize_nchw.1} parent=5 // pred_check_branch
        %145 = sbr.rel (%p142) target = $region32
      $region31: #{bilinear_resize_nchw.1} parent=5 // pred_region
        %s146 = ssub.s32 %s12, 1
        %s147 = smul.u32 4, %s17
        %p148 = scmp.lt.s32.totalorder %s147, 7
        %s149 = scalar_select %p148, %s147, 7
        %s150 = smul.addr %s149, 8
        %s151 = scalar_lea.vmem %s0, %s150
        %p152 = pneg %p38
        %p153 = pneg %p35
        %p154 = pneg %p59
        %p155 = pneg %p56
        %p156 = pneg %p80
        %p157 = pneg %p77
        %p158 = pneg %p106
        %p159 = pneg %p103
        %s160 = sand.u32 %s93, 1
        %s161 = scalar_lea.sflag [#allocation4], %s160
        %s162 = sand.u32 %s93, 1
        %s163 = smul.addr %s162, 64
        %s164 = scalar_lea.vmem [#allocation3], %s163
        %s165 = smul.u32 4, %s17
        %p166 = scmp.lt.s32.totalorder %s165, 7
        %s167 = scalar_select %p166, %s165, 7
        %s168 = smul.addr %s167, 8
        %s169 = scalar_lea.vmem %s0, %s168
        %s170 = smul.u32 4, %s17
        %s171 = smul.u32 4, %s17
        %v173 = vld [vmem:[%s169] sm:$0xff]
        %v174 = vld [vmem:[%s169 + $0x8] sm:$0xff]
        %v175 = vld [vmem:[%s169 + $0x10] sm:$0xff]
        %v176 = vld [vmem:[%s169 + $0x18] sm:$0xff]
        %v177 = vpack.c.bf16 %v174, %v173
        %v178 = vpack.c.bf16 %v176, %v175
        %v179 = vld [vmem:[%s2] sm:$0xff]
        %v180 = vpack.c.bf16 %v179, %v179
        %vm181 = vcmask 64512
        %v183 = vsel %vm181, %v177, 0
        %v186 = vsel %vm181, %v178, 0
        %vm188 = vcmask 1043456
        %v190 = vsel %vm188, %v180, 0
        %192 = vmatprep.subr.bf16.mxu0 0
        %193 = vmatpush1.bf16.msra.mxu0 %v190
        %194 = vmatprep.subr.bf16.mxu0 0
        %195 = vmatpush1.bf16.msra.mxu0 0
        %196 = vmatprep.subr.bf16.mxu0 0
        %197 = vmatpush1.bf16.msra.mxu0 0
        %198 = vmatprep.subr.bf16.mxu0 0
        %199 = vmatpush1.bf16.msra.mxu0 0
        %200 = vmatprep.subr.bf16.mxu0 0
        %201 = vmatpush1.bf16.msra.mxu0 0
        %202 = vmatprep.subr.bf16.mxu0 0
        %203 = vmatpush1.bf16.msra.mxu0 0
        %204 = vmatprep.subr.bf16.mxu0 0
        %205 = vmatpush1.bf16.msra.mxu0 0
        %206 = vmatprep.subr.bf16.mxu0 0
        %207 = vmatpush1.bf16.msra.mxu0 0
        %208 = vmatprep.subr.bf16.mxu0 0
        %209 = vmatpush1.bf16.msra.mxu0 0
        %210 = vmatprep.subr.bf16.mxu0 0
        %211 = vmatpush1.bf16.msra.mxu0 0
        %212 = vmatprep.subr.bf16.mxu0 0
        %213 = vmatpush1.bf16.msra.mxu0 0
        %214 = vmatprep.subr.bf16.mxu0 0
        %215 = vmatpush1.bf16.msra.mxu0 0
        %216 = vmatprep.subr.bf16.mxu0 0
        %217 = vmatpush1.bf16.msra.mxu0 0
        %218 = vmatprep.subr.bf16.mxu0 0
        %219 = vmatpush1.bf16.msra.mxu0 0
        %220 = vmatprep.subr.bf16.mxu0 0
        %221 = vmatpush1.bf16.msra.mxu0 0
        %222 = vmatprep.subr.bf16.mxu0 0
        %223 = vmatpush1.bf16.msra.mxu0 0
        %224 = vmatprep.mubr.bf16.mxu0 0
        %225 = vmatmul.mubr.bf16.gmra.mrb[0].mxu0 %v183
        %v226 = vpop.f32.mrb[0].mxu0
        %v227 = vadd.f32 0.0, %v226
        %v228 = vpop.f32.mrb[0].mxu0
        %v229 = vpop.f32.mrb[0].mxu0
        %v230 = vadd.f32 0.0, %v229
        %v231 = vpop.f32.mrb[0].mxu0
        %232 = vmatprep.mubr.bf16.mxu0 0
        %233 = vmatmul.mubr.bf16.gmra.mrb[0].mxu0 %v186
        %v234 = vpop.f32.mrb[0].mxu0
        %v235 = vadd.f32 0.0, %v234
        %v236 = vpop.f32.mrb[0].mxu0
        %v237 = vpop.f32.mrb[0].mxu0
        %v238 = vadd.f32 0.0, %v237
        %v239 = vpop.f32.mrb[0].mxu0
        %240 = vdwg.mxu0
        %vm241 = vcmask 130048
        %242 = vst.msk [vmem:[#allocation2] sm:$0xff] %vm241, %v227
        %243 = vst.msk [vmem:[#allocation2 + $0x8] sm:$0xff] %vm241, %v230
        %244 = vst.msk [vmem:[#allocation2 + $0x10] sm:$0xff] %vm241, %v235
        %245 = vst.msk [vmem:[#allocation2 + $0x18] sm:$0xff] %vm241, %v238
        %v246 = vld [vmem:[%s1] sm:$0xff]
        %v247 = vld [vmem:[%s1 + $0x8] sm:$0xff]
        %v248 = vld [vmem:[#allocation2] sm:$0xff]
        %v250 = vsel %vm181, %v246, 0
        %v253 = vsel %vm181, %v247, 0
        %255 = vmatprep.subr.mxu0 0.0
        %256 = vmatpush1.msra.mxu0 %v248
        %257 = vmatprep.subr.mxu0 0.0
        %258 = vmatpush1.msra.mxu0 0.0
        %259 = vmatprep.subr.mxu0 0.0
        %260 = vmatpush1.msra.mxu0 0.0
        %261 = vmatprep.subr.mxu0 0.0
        %262 = vmatpush1.msra.mxu0 0.0
        %263 = vmatprep.subr.mxu0 0.0
        %264 = vmatpush1.msra.mxu0 0.0
        %265 = vmatprep.subr.mxu0 0.0
        %266 = vmatpush1.msra.mxu0 0.0
        %267 = vmatprep.subr.mxu0 0.0
        %268 = vmatpush1.msra.mxu0 0.0
        %269 = vmatprep.subr.mxu0 0.0
        %270 = vmatpush1.msra.mxu0 0.0
        %271 = vmatprep.subr.mxu0 0.0
        %272 = vmatpush1.msra.mxu0 0.0
        %273 = vmatprep.subr.mxu0 0.0
        %274 = vmatpush1.msra.mxu0 0.0
        %275 = vmatprep.subr.mxu0 0.0
        %276 = vmatpush1.msra.mxu0 0.0
        %277 = vmatprep.subr.mxu0 0.0
        %278 = vmatpush1.msra.mxu0 0.0
        %279 = vmatprep.subr.mxu0 0.0
        %280 = vmatpush1.msra.mxu0 0.0
        %281 = vmatprep.subr.mxu0 0.0
        %282 = vmatpush1.msra.mxu0 0.0
        %283 = vmatprep.subr.mxu0 0.0
        %284 = vmatpush1.msra.mxu0 0.0
        %285 = vmatprep.subr.mxu0 0.0
        %286 = vmatpush1.msra.mxu0 0.0
        %287 = vmatprep.subr.mxu0 0.0
        %288 = vmatpush1.msra.mxu0 0.0
        %289 = vmatprep.subr.mxu0 0.0
        %290 = vmatpush1.msra.mxu0 0.0
        %291 = vmatprep.subr.mxu0 0.0
        %292 = vmatpush1.msra.mxu0 0.0
        %293 = vmatprep.subr.mxu0 0.0
        %294 = vmatpush1.msra.mxu0 0.0
        %295 = vmatprep.subr.mxu0 0.0
        %296 = vmatpush1.msra.mxu0 0.0
        %297 = vmatprep.subr.mxu0 0.0
        %298 = vmatpush1.msra.mxu0 0.0
        %299 = vmatprep.subr.mxu0 0.0
        %300 = vmatpush1.msra.mxu0 0.0
        %301 = vmatprep.subr.mxu0 0.0
        %302 = vmatpush1.msra.mxu0 0.0
        %303 = vmatprep.subr.mxu0 0.0
        %304 = vmatpush1.msra.mxu0 0.0
        %305 = vmatprep.subr.mxu0 0.0
        %306 = vmatpush1.msra.mxu0 0.0
        %307 = vmatprep.subr.mxu0 0.0
        %308 = vmatpush1.msra.mxu0 0.0
        %309 = vmatprep.subr.mxu0 0.0
        %310 = vmatpush1.msra.mxu0 0.0
        %311 = vmatprep.subr.mxu0 0.0
        %312 = vmatpush1.msra.mxu0 0.0
        %313 = vmatprep.subr.mxu0 0.0
        %314 = vmatpush1.msra.mxu0 0.0
        %315 = vmatprep.subr.mxu0 0.0
        %316 = vmatpush1.msra.mxu0 0.0
        %317 = vmatprep.subr.mxu0 0.0
        %318 = vmatpush1.msra.mxu0 0.0
        %319 = vmatprep.mubr.f32.mxu0 0.0
        %320 = vmatmul.mubr.f32.gmra.mrb[0].mxu0 %v250
        %v321 = vpop.f32.mrb[0].mxu0
        %v322 = vadd.f32 0.0, %v321
        %v323 = vpop.f32.mrb[0].mxu0
        %324 = vmatprep.mubr.f32.mxu0 0.0
        %325 = vmatmul.mubr.f32.gmra.mrb[0].mxu0 %v253
        %v326 = vpop.f32.mrb[0].mxu0
        %v327 = vadd.f32 0.0, %v326
        %v328 = vpop.f32.mrb[0].mxu0
        %329 = vdwg.mxu0
        %330 = vst.msk [vmem:[%s164] sm:$0xff] %vm241, %v322
        %331 = vst.msk [vmem:[%s164 + $0x8] sm:$0xff] %vm241, %v327
        %s332 = scalar_lea.vmem [#allocation2], 8
        %v333 = vld [vmem:[%s332] sm:$0xff]
        %334 = vmatprep.subr.mxu0 0.0
        %335 = vmatpush1.msra.mxu0 %v333
        %336 = vmatprep.subr.mxu0 0.0
        %337 = vmatpush1.msra.mxu0 0.0
        %338 = vmatprep.subr.mxu0 0.0
        %339 = vmatpush1.msra.mxu0 0.0
        %340 = vmatprep.subr.mxu0 0.0
        %341 = vmatpush1.msra.mxu0 0.0
        %342 = vmatprep.subr.mxu0 0.0
        %343 = vmatpush1.msra.mxu0 0.0
        %344 = vmatprep.subr.mxu0 0.0
        %345 = vmatpush1.msra.mxu0 0.0
        %346 = vmatprep.subr.mxu0 0.0
        %347 = vmatpush1.msra.mxu0 0.0
        %348 = vmatprep.subr.mxu0 0.0
        %349 = vmatpush1.msra.mxu0 0.0
        %350 = vmatprep.subr.mxu0 0.0
        %351 = vmatpush1.msra.mxu0 0.0
        %352 = vmatprep.subr.mxu0 0.0
        %353 = vmatpush1.msra.mxu0 0.0
        %354 = vmatprep.subr.mxu0 0.0
        %355 = vmatpush1.msra.mxu0 0.0
        %356 = vmatprep.subr.mxu0 0.0
        %357 = vmatpush1.msra.mxu0 0.0
        %358 = vmatprep.subr.mxu0 0.0
        %359 = vmatpush1.msra.mxu0 0.0
        %360 = vmatprep.subr.mxu0 0.0
        %361 = vmatpush1.msra.mxu0 0.0
        %362 = vmatprep.subr.mxu0 0.0
        %363 = vmatpush1.msra.mxu0 0.0
        %364 = vmatprep.subr.mxu0 0.0
        %365 = vmatpush1.msra.mxu0 0.0
        %366 = vmatprep.subr.mxu0 0.0
        %367 = vmatpush1.msra.mxu0 0.0
        %368 = vmatprep.subr.mxu0 0.0
        %369 = vmatpush1.msra.mxu0 0.0
        %370 = vmatprep.subr.mxu0 0.0
        %371 = vmatpush1.msra.mxu0 0.0
        %372 = vmatprep.subr.mxu0 0.0
        %373 = vmatpush1.msra.mxu0 0.0
        %374 = vmatprep.subr.mxu0 0.0
        %375 = vmatpush1.msra.mxu0 0.0
        %376 = vmatprep.subr.mxu0 0.0
        %377 = vmatpush1.msra.mxu0 0.0
        %378 = vmatprep.subr.mxu0 0.0
        %379 = vmatpush1.msra.mxu0 0.0
        %380 = vmatprep.subr.mxu0 0.0
        %381 = vmatpush1.msra.mxu0 0.0
        %382 = vmatprep.subr.mxu0 0.0
        %383 = vmatpush1.msra.mxu0 0.0
        %384 = vmatprep.subr.mxu0 0.0
        %385 = vmatpush1.msra.mxu0 0.0
        %386 = vmatprep.subr.mxu0 0.0
        %387 = vmatpush1.msra.mxu0 0.0
        %388 = vmatprep.subr.mxu0 0.0
        %389 = vmatpush1.msra.mxu0 0.0
        %390 = vmatprep.subr.mxu0 0.0
        %391 = vmatpush1.msra.mxu0 0.0
        %392 = vmatprep.subr.mxu0 0.0
        %393 = vmatpush1.msra.mxu0 0.0
        %394 = vmatprep.subr.mxu0 0.0
        %395 = vmatpush1.msra.mxu0 0.0
        %396 = vmatprep.subr.mxu0 0.0
        %397 = vmatpush1.msra.mxu0 0.0
        %398 = vmatprep.mubr.f32.mxu0 0.0
        %399 = vmatmul.mubr.f32.gmra.mrb[0].mxu0 %v250
        %v400 = vpop.f32.mrb[0].mxu0
        %v401 = vadd.f32 0.0, %v400
        %v402 = vpop.f32.mrb[0].mxu0
        %403 = vmatprep.mubr.f32.mxu0 0.0
        %404 = vmatmul.mubr.f32.gmra.mrb[0].mxu0 %v253
        %v405 = vpop.f32.mrb[0].mxu0
        %v406 = vadd.f32 0.0, %v405
        %v407 = vpop.f32.mrb[0].mxu0
        %408 = vdwg.mxu0
        %s409 = scalar_lea.vmem %s164, 16 [#allocation3]
        %410 = vst.msk [vmem:[%s409] sm:$0xff] %vm241, %v401
        %411 = vst.msk [vmem:[%s409 + $0x8] sm:$0xff] %vm241, %v406
        %s412 = scalar_lea.vmem [#allocation2], 16
        %v413 = vld [vmem:[%s412] sm:$0xff]
        %414 = vmatprep.subr.mxu0 0.0
        %415 = vmatpush1.msra.mxu0 %v413
        %416 = vmatprep.subr.mxu0 0.0
        %417 = vmatpush1.msra.mxu0 0.0
        %418 = vmatprep.subr.mxu0 0.0
        %419 = vmatpush1.msra.mxu0 0.0
        %420 = vmatprep.subr.mxu0 0.0
        %421 = vmatpush1.msra.mxu0 0.0
        %422 = vmatprep.subr.mxu0 0.0
        %423 = vmatpush1.msra.mxu0 0.0
        %424 = vmatprep.subr.mxu0 0.0
        %425 = vmatpush1.msra.mxu0 0.0
        %426 = vmatprep.subr.mxu0 0.0
        %427 = vmatpush1.msra.mxu0 0.0
        %428 = vmatprep.subr.mxu0 0.0
        %429 = vmatpush1.msra.mxu0 0.0
        %430 = vmatprep.subr.mxu0 0.0
        %431 = vmatpush1.msra.mxu0 0.0
        %432 = vmatprep.subr.mxu0 0.0
        %433 = vmatpush1.msra.mxu0 0.0
        %434 = vmatprep.subr.mxu0 0.0
        %435 = vmatpush1.msra.mxu0 0.0
        %436 = vmatprep.subr.mxu0 0.0
        %437 = vmatpush1.msra.mxu0 0.0
        %438 = vmatprep.subr.mxu0 0.0
        %439 = vmatpush1.msra.mxu0 0.0
        %440 = vmatprep.subr.mxu0 0.0
        %441 = vmatpush1.msra.mxu0 0.0
        %442 = vmatprep.subr.mxu0 0.0
        %443 = vmatpush1.msra.mxu0 0.0
        %444 = vmatprep.subr.mxu0 0.0
        %445 = vmatpush1.msra.mxu0 0.0
        %446 = vmatprep.subr.mxu0 0.0
        %447 = vmatpush1.msra.mxu0 0.0
        %448 = vmatprep.subr.mxu0 0.0
        %449 = vmatpush1.msra.mxu0 0.0
        %450 = vmatprep.subr.mxu0 0.0
        %451 = vmatpush1.msra.mxu0 0.0
        %452 = vmatprep.subr.mxu0 0.0
        %453 = vmatpush1.msra.mxu0 0.0
        %454 = vmatprep.subr.mxu0 0.0
        %455 = vmatpush1.msra.mxu0 0.0
        %456 = vmatprep.subr.mxu0 0.0
        %457 = vmatpush1.msra.mxu0 0.0
        %458 = vmatprep.subr.mxu0 0.0
        %459 = vmatpush1.msra.mxu0 0.0
        %460 = vmatprep.subr.mxu0 0.0
        %461 = vmatpush1.msra.mxu0 0.0
        %462 = vmatprep.subr.mxu0 0.0
        %463 = vmatpush1.msra.mxu0 0.0
        %464 = vmatprep.subr.mxu0 0.0
        %465 = vmatpush1.msra.mxu0 0.0
        %466 = vmatprep.subr.mxu0 0.0
        %467 = vmatpush1.msra.mxu0 0.0
        %468 = vmatprep.subr.mxu0 0.0
        %469 = vmatpush1.msra.mxu0 0.0
        %470 = vmatprep.subr.mxu0 0.0
        %471 = vmatpush1.msra.mxu0 0.0
        %472 = vmatprep.subr.mxu0 0.0
        %473 = vmatpush1.msra.mxu0 0.0
        %474 = vmatprep.subr.mxu0 0.0
        %475 = vmatpush1.msra.mxu0 0.0
        %476 = vmatprep.subr.mxu0 0.0
        %477 = vmatpush1.msra.mxu0 0.0
        %478 = vmatprep.mubr.f32.mxu0 0.0
        %479 = vmatmul.mubr.f32.gmra.mrb[0].mxu0 %v250
        %v480 = vpop.f32.mrb[0].mxu0
        %v481 = vadd.f32 0.0, %v480
        %v482 = vpop.f32.mrb[0].mxu0
        %483 = vmatprep.mubr.f32.mxu0 0.0
        %484 = vmatmul.mubr.f32.gmra.mrb[0].mxu0 %v253
        %v485 = vpop.f32.mrb[0].mxu0
        %v486 = vadd.f32 0.0, %v485
        %v487 = vpop.f32.mrb[0].mxu0
        %488 = vdwg.mxu0
        %s489 = scalar_lea.vmem %s164, 32 [#allocation3]
        %490 = vst.msk [vmem:[%s489] sm:$0xff] %vm241, %v481
        %491 = vst.msk [vmem:[%s489 + $0x8] sm:$0xff] %vm241, %v486
        %s492 = scalar_lea.vmem [#allocation2], 24
        %v493 = vld [vmem:[%s492] sm:$0xff]
        %494 = vmatprep.subr.mxu0 0.0
        %495 = vmatpush1.msra.mxu0 %v493
        %496 = vmatprep.subr.mxu0 0.0
        %497 = vmatpush1.msra.mxu0 0.0
        %498 = vmatprep.subr.mxu0 0.0
        %499 = vmatpush1.msra.mxu0 0.0
        %500 = vmatprep.subr.mxu0 0.0
        %501 = vmatpush1.msra.mxu0 0.0
        %502 = vmatprep.subr.mxu0 0.0
        %503 = vmatpush1.msra.mxu0 0.0
        %504 = vmatprep.subr.mxu0 0.0
        %505 = vmatpush1.msra.mxu0 0.0
        %506 = vmatprep.subr.mxu0 0.0
        %507 = vmatpush1.msra.mxu0 0.0
        %508 = vmatprep.subr.mxu0 0.0
        %509 = vmatpush1.msra.mxu0 0.0
        %510 = vmatprep.subr.mxu0 0.0
        %511 = vmatpush1.msra.mxu0 0.0
        %512 = vmatprep.subr.mxu0 0.0
        %513 = vmatpush1.msra.mxu0 0.0
        %514 = vmatprep.subr.mxu0 0.0
        %515 = vmatpush1.msra.mxu0 0.0
        %516 = vmatprep.subr.mxu0 0.0
        %517 = vmatpush1.msra.mxu0 0.0
        %518 = vmatprep.subr.mxu0 0.0
        %519 = vmatpush1.msra.mxu0 0.0
        %520 = vmatprep.subr.mxu0 0.0
        %521 = vmatpush1.msra.mxu0 0.0
        %522 = vmatprep.subr.mxu0 0.0
        %523 = vmatpush1.msra.mxu0 0.0
        %524 = vmatprep.subr.mxu0 0.0
        %525 = vmatpush1.msra.mxu0 0.0
        %526 = vmatprep.subr.mxu0 0.0
        %527 = vmatpush1.msra.mxu0 0.0
        %528 = vmatprep.subr.mxu0 0.0
        %529 = vmatpush1.msra.mxu0 0.0
        %530 = vmatprep.subr.mxu0 0.0
        %531 = vmatpush1.msra.mxu0 0.0
        %532 = vmatprep.subr.mxu0 0.0
        %533 = vmatpush1.msra.mxu0 0.0
        %534 = vmatprep.subr.mxu0 0.0
        %535 = vmatpush1.msra.mxu0 0.0
        %536 = vmatprep.subr.mxu0 0.0
        %537 = vmatpush1.msra.mxu0 0.0
        %538 = vmatprep.subr.mxu0 0.0
        %539 = vmatpush1.msra.mxu0 0.0
        %540 = vmatprep.subr.mxu0 0.0
        %541 = vmatpush1.msra.mxu0 0.0
        %542 = vmatprep.subr.mxu0 0.0
        %543 = vmatpush1.msra.mxu0 0.0
        %544 = vmatprep.subr.mxu0 0.0
        %545 = vmatpush1.msra.mxu0 0.0
        %546 = vmatprep.subr.mxu0 0.0
        %547 = vmatpush1.msra.mxu0 0.0
        %548 = vmatprep.subr.mxu0 0.0
        %549 = vmatpush1.msra.mxu0 0.0
        %550 = vmatprep.subr.mxu0 0.0
        %551 = vmatpush1.msra.mxu0 0.0
        %552 = vmatprep.subr.mxu0 0.0
        %553 = vmatpush1.msra.mxu0 0.0
        %554 = vmatprep.subr.mxu0 0.0
        %555 = vmatpush1.msra.mxu0 0.0
        %556 = vmatprep.subr.mxu0 0.0
        %557 = vmatpush1.msra.mxu0 0.0
        %558 = vmatprep.mubr.f32.mxu0 0.0
        %559 = vmatmul.mubr.f32.gmra.mrb[0].mxu0 %v250
        %v560 = vpop.f32.mrb[0].mxu0
        %v561 = vadd.f32 0.0, %v560
        %v562 = vpop.f32.mrb[0].mxu0
        %563 = vmatprep.mubr.f32.mxu0 0.0
        %564 = vmatmul.mubr.f32.gmra.mrb[0].mxu0 %v253
        %v565 = vpop.f32.mrb[0].mxu0
        %v566 = vadd.f32 0.0, %v565
        %v567 = vpop.f32.mrb[0].mxu0
        %568 = vdwg.mxu0
        %s569 = scalar_lea.vmem %s164, 48 [#allocation3]
        %570 = vst.msk [vmem:[%s569] sm:$0xff] %vm241, %v561
        %571 = vst.msk [vmem:[%s569 + $0x8] sm:$0xff] %vm241, %v566
        %s572 = sand.u32 %s93, 1
        %s573 = scalar_lea.sflag [#allocation4], %s572
        %s574 = sand.u32 %s93, 1
        %s575 = smul.addr %s574, 64
        %s576 = scalar_lea.vmem [#allocation3], %s575
        // Predicated region
        $region33: #{bilinear_resize_nchw.1} parent=31 // pred_check
          %p577 = pneg %p103
        $region34: #{bilinear_resize_nchw.1} parent=31 // pred_check_branch
          %579 = sbr.rel (%p577) target = $region36
        $region35: #{bilinear_resize_nchw.1} parent=31 // pred_region
          %s580 = smul.u32 4, %s17
          %s582 = ssub.s32 1024, 1024
          %583 = vsyncadd %s573, %s582
          %s584 = smul.addr %s580, 2
          %s585 = smul.addr %s584, 128
          %s586 = scalar_lea.hbm %s3, %s585
          %s587 = sshll.u32 %s576, 4
          %s588 = int_to_ptr.vmem [resolvable:$true] %s587
          %593 = dma.vmem_to_hbm [thread:$0]  %s588, 1024, %s586, %s573, 128, 128, 8
        $region36: #{bilinear_resize_nchw.1} parent=31 // pred_fallthru
          _
      $region32: #{bilinear_resize_nchw.1} parent=5 // pred_fallthru
        _
      %p594 = scmp.le.s32.totalorder 2, %s12
      // Predicated region
      $region37: #{bilinear_resize_nchw.1} parent=5 // pred_check
        %p595 = pneg %p594
      $region38: #{bilinear_resize_nchw.1} parent=5 // pred_check_branch
        %597 = sbr.rel (%p595) target = $region40
      $region39: #{bilinear_resize_nchw.1} parent=5 // pred_region
        %s598 = ssub.s32 %s12, 2
        // Predicated region
        $region41: #{bilinear_resize_nchw.1} parent=39 // pred_check
          %p599 = pneg %p109
        $region42: #{bilinear_resize_nchw.1} parent=39 // pred_check_branch
          %601 = sbr.rel (%p599) target = $region44
        $region43: #{bilinear_resize_nchw.1} parent=39 // pred_region
          %s602 = sand.u32 %s94, 1
          %s603 = scalar_lea.sflag [#allocation4], %s602
          %s604 = sand.u32 %s94, 1
          %s605 = smul.addr %s604, 64
          %s606 = scalar_lea.vmem [#allocation3], %s605
          %607 = dma.done %s603, 1024
        $region44: #{bilinear_resize_nchw.1} parent=39 // pred_fallthru
          _
      $region40: #{bilinear_resize_nchw.1} parent=5 // pred_fallthru
        _
    $region6: #{bilinear_resize_nchw.1} parent=1 // loop_footer
      %s16 = sadd.s32 1, %s12
    $region7: #{bilinear_resize_nchw.1} parent=1 // loop_footer_branch
      %11 = sbr.rel target = $region3
    $region8: #{bilinear_resize_nchw.1} parent=1 // loop_exit
      _
    %608 = vsyncpa [#allocation4], 1
    %s609 = scalar_lea.sflag [#allocation4], 1
    %610 = vsyncpa %s609, 1

</llo_original>
